<compile_context>
chip_gen: v7x
topology: tpu7x:2x2x1
jax: 0.10.0
libtpu: 0.0.40
codegen_flags: <defaults>
</compile_context>

<pallas_src>
import functools

import jax
import jax.numpy as jnp
from jax.experimental import pallas as pl
from jax.experimental.pallas import tpu as pltpu


_LANE = 128


def _round_up(x, m):
    return ((x + m - 1) // m) * m


def sac_value_kernel(xt_ref, w1_ref, b1_ref, w2_ref, b2_ref, wo_ref, bo_ref,
                     o_ref, *, matmul_dtype=None):
    """One batch tile, batch on the lane axis.

    xt_ref: [state_dim, tile_b]   streamed input tile (x^T)
    w1_ref: [hidden, state_dim]   resident, PyTorch [out, in] layout
    b1_ref: [hidden, 1]           bias column (broadcasts over batch lanes)
    w2_ref: [hidden, hidden]
    b2_ref: [hidden, 1]
    wo_ref: [hidden, 1]           value-head weight column
    bo_ref: [1, 1] (SMEM)         value-head bias
    o_ref : [1, tile_b]           lane-dense output tile (v^T)
    """
    if matmul_dtype is None:
        cast = lambda a: a
    else:
        cast = lambda a: a.astype(matmul_dtype)

    # Layer 1: h1^T = relu(W1 @ x^T + b1)   (MXU matmul, f32 accumulation).
    h = jnp.dot(cast(w1_ref[...]), cast(xt_ref[...]),
                preferred_element_type=jnp.float32)
    h = jnp.maximum(h + b1_ref[...], 0.0)
    # Layer 2: h2^T = relu(W2 @ h1^T + b2).
    h = jnp.dot(cast(w2_ref[...]), cast(h), preferred_element_type=jnp.float32)
    h = jnp.maximum(h + b2_ref[...], 0.0)
    # Value head (hidden -> 1): broadcast multiply (VPU) + sublane reduce (XLU)
    # -> lane-dense [1, tile_b] row; keeps the N=1 matmul off the MXU.
    v = jnp.sum(h * wo_ref[...], axis=0, keepdims=True) + bo_ref[0, 0]
    o_ref[...] = v.astype(o_ref.dtype)


def sac_value_forward(state, params, *, tile_b=2048, matmul_dtype=None,
                      vmem_limit_bytes=None):
    """state: [B, state_dim] f32 -> value: [B, 1] f32."""
    w1, b1, w2, b2, wo, bo = params
    B, state_dim = state.shape
    hidden = w1.shape[0]

    # Lane-dense batch tiling: tile size is a multiple of 128 lanes.
    b_ceil = _round_up(B, _LANE)
    tile_b = max(_LANE, min(_round_up(tile_b, _LANE), b_ceil))
    # Keep >= 2 grid steps when the batch allows it so the "parallel" batch
    # axis shards across both TensorCores on v7x.
    if b_ceil >= 2 * _LANE and tile_b > b_ceil // 2:
        tile_b = _round_up(b_ceil // 2, _LANE)
    b_pad = _round_up(B, tile_b)
    num_tiles = b_pad // tile_b

    # Batch-on-lanes layout: stream x^T tiles of [state_dim, tile_b].
    xt = state.T
    if b_pad != B:
        xt = jnp.pad(xt, ((0, 0), (0, b_pad - B)))

    flops = 2 * b_pad * (state_dim * hidden + hidden * hidden + hidden)
    bytes_accessed = 4 * (
        b_pad * state_dim                         # streamed input
        + b_pad                                   # output
        + hidden * state_dim + hidden * hidden    # weights (resident)
        + 3 * hidden + 1                          # biases + head column
    )

    kernel = functools.partial(sac_value_kernel, matmul_dtype=matmul_dtype)

    out = pl.pallas_call(
        kernel,
        out_shape=jax.ShapeDtypeStruct((1, b_pad), jnp.float32),
        grid=(num_tiles,),
        in_specs=[
            pl.BlockSpec((state_dim, tile_b), lambda i: (0, i)),   # x^T (streamed)
            pl.BlockSpec((hidden, state_dim), lambda i: (0, 0)),   # w1 (resident)
            pl.BlockSpec((hidden, 1), lambda i: (0, 0)),           # b1
            pl.BlockSpec((hidden, hidden), lambda i: (0, 0)),      # w2
            pl.BlockSpec((hidden, 1), lambda i: (0, 0)),           # b2
            pl.BlockSpec((hidden, 1), lambda i: (0, 0)),           # head column
            pl.BlockSpec(memory_space=pltpu.MemorySpace.SMEM),     # head bias
        ],
        out_specs=pl.BlockSpec((1, tile_b), lambda i: (0, i)),     # v^T (lane-dense)
        compiler_params=pltpu.CompilerParams(
            dimension_semantics=("parallel",),
            vmem_limit_bytes=vmem_limit_bytes,
        ),
        cost_estimate=pl.CostEstimate(
            flops=flops, transcendentals=0, bytes_accessed=bytes_accessed),
    )(xt, w1, b1, w2, b2, wo, bo)

    return out[0, :B][:, None]


def init_params(key, state_dim, hidden_dim):
    """PyTorch nn.Linear default init: U[-1/sqrt(fan_in), +1/sqrt(fan_in)].

    Weights are kept in PyTorch's native [out_features, in_features] layout
    (exactly what the batch-on-lanes kernel consumes); biases and the value
    head are stored as columns so they broadcast along the batch-lane axis.
    """
    def uniform(k, shape, fan_in):
        bound = 1.0 / float(fan_in) ** 0.5
        return jax.random.uniform(k, shape, jnp.float32, -bound, bound)

    k1, k2, k3, k4, k5, k6 = jax.random.split(key, 6)
    w1 = uniform(k1, (hidden_dim, state_dim), state_dim)     # Linear(S, H).weight
    b1 = uniform(k2, (hidden_dim, 1), state_dim)              # Linear(S, H).bias
    w2 = uniform(k3, (hidden_dim, hidden_dim), hidden_dim)    # Linear(H, H).weight
    b2 = uniform(k4, (hidden_dim, 1), hidden_dim)             # Linear(H, H).bias
    wo = uniform(k5, (hidden_dim, 1), hidden_dim)             # fc_out.weight^T
    bo = uniform(k6, (1, 1), hidden_dim)                      # fc_out.bias
    return (w1, b1, w2, b2, wo, bo)


def reference_forward(state, params):
    """Pure-JAX reference (standard [B, features] dataflow, high precision)."""
    w1, b1, w2, b2, wo, bo = params
    h = jnp.maximum(jnp.dot(state, w1.T, precision="highest") + b1.T, 0.0)
    h = jnp.maximum(jnp.dot(h, w2.T, precision="highest") + b2.T, 0.0)
    return jnp.dot(h, wo, precision="highest") + bo


if __name__ == "__main__":
    state_dim, hidden_dim = 16, 32

    key = jax.random.PRNGKey(0)
    k_small, k_big, k_params = jax.random.split(key, 3)
    params = init_params(k_params, state_dim, hidden_dim)

    # Small batch: 20 -> padded to a single 128-lane tile (1 grid step).
    state_small = jax.random.normal(k_small, (20, state_dim), jnp.float32)
    out_small = jax.block_until_ready(sac_value_forward(state_small, params))
    ref_small = reference_forward(state_small, params)
    assert out_small.shape == (20, 1), out_small.shape
    assert jnp.allclose(out_small, ref_small, atol=1e-4, rtol=1e-4)

    # Larger batch: 300 -> two 256-lane tiles (multi-step grid, batch padding,
    # and both-TensorCore sharding of the "parallel" axis on v7x).
    state_big = jax.random.normal(k_big, (300, state_dim), jnp.float32)
    out_big = jax.block_until_ready(sac_value_forward(state_big, params))
    ref_big = reference_forward(state_big, params)
    assert out_big.shape == (300, 1), out_big.shape
    assert jnp.allclose(out_big, ref_big, atol=1e-4, rtol=1e-4)

    # bf16 MXU operands (v6e/v7x fast path; epilogue stays f32): loose tolerance.
    out_bf16 = jax.block_until_ready(
        sac_value_forward(state_big, params, matmul_dtype=jnp.bfloat16))
    assert jnp.allclose(out_bf16, ref_big, atol=5e-2, rtol=5e-2)

    print("KERNEL_OK")
</pallas_src>

<mosaic_0001>
module attributes {stable_mosaic.version = 11 : i64} {
  func.func @sac_value_kernel(%arg0: i32, %arg1: memref<16x128xf32, #tpu.memory_space<vmem>>, %arg2: memref<32x16xf32, #tpu.memory_space<vmem>>, %arg3: memref<32x1xf32, #tpu.memory_space<vmem>>, %arg4: memref<32x32xf32, #tpu.memory_space<vmem>>, %arg5: memref<32x1xf32, #tpu.memory_space<vmem>>, %arg6: memref<32x1xf32, #tpu.memory_space<vmem>>, %arg7: memref<1x1xf32, #tpu.memory_space<smem>>, %arg8: memref<1x128xf32, #tpu.memory_space<vmem>>) attributes {dimension_semantics = [#tpu.dimension_semantics<parallel>], iteration_bounds = array<i64: 1>, scalar_prefetch = 0 : i64, scratch_operands = 0 : i64, tpu.core_type = #tpu.core_type<tc>, window_params = [{transform_indices = @transform_0, window_bounds = array<i64: 16, 128>}, {pipeline_mode = #tpu.pipeline_mode<synchronous>, transform_indices = @transform_1, window_bounds = array<i64: 32, 16>}, {pipeline_mode = #tpu.pipeline_mode<synchronous>, transform_indices = @transform_2, window_bounds = array<i64: 32, 1>}, {pipeline_mode = #tpu.pipeline_mode<synchronous>, transform_indices = @transform_3, window_bounds = array<i64: 32, 32>}, {pipeline_mode = #tpu.pipeline_mode<synchronous>, transform_indices = @transform_4, window_bounds = array<i64: 32, 1>}, {pipeline_mode = #tpu.pipeline_mode<synchronous>, transform_indices = @transform_5, window_bounds = array<i64: 32, 1>}, {transform_indices = @transform_6, window_bounds = array<i64: 1, 1>}, {transform_indices = @transform_7, window_bounds = array<i64: 1, 128>}]} {
    %c0 = arith.constant 0 : index
    %c0_0 = arith.constant 0 : index
    %0 = vector.load %arg2[%c0, %c0_0] : memref<32x16xf32, #tpu.memory_space<vmem>>, vector<32x16xf32>
    %c0_1 = arith.constant 0 : index
    %c0_2 = arith.constant 0 : index
    %1 = vector.load %arg1[%c0_1, %c0_2] : memref<16x128xf32, #tpu.memory_space<vmem>>, vector<16x128xf32>
    %cst = arith.constant dense<0.000000e+00> : vector<32x128xf32>
    %2 = tpu.matmul %0, %1, %cst {dimension_numbers = #tpu.dot_dimension_numbers<[1], [0], [0], [1], [0, 0, 1, 1], [], []>} : vector<32x16xf32>, vector<16x128xf32>, vector<32x128xf32> -> vector<32x128xf32>
    %c0_3 = arith.constant 0 : index
    %c0_4 = arith.constant 0 : index
    %3 = vector.load %arg3[%c0_3, %c0_4] : memref<32x1xf32, #tpu.memory_space<vmem>>, vector<32x1xf32>
    %4 = vector.broadcast %3 : vector<32x1xf32> to vector<32x128xf32>
    %5 = arith.addf %2, %4 : vector<32x128xf32>
    %cst_5 = arith.constant 0.000000e+00 : f32
    %6 = vector.broadcast %cst_5 : f32 to vector<32x128xf32>
    %7 = arith.maximumf %5, %6 : vector<32x128xf32>
    %c0_6 = arith.constant 0 : index
    %c0_7 = arith.constant 0 : index
    %8 = vector.load %arg4[%c0_6, %c0_7] : memref<32x32xf32, #tpu.memory_space<vmem>>, vector<32x32xf32>
    %cst_8 = arith.constant dense<0.000000e+00> : vector<32x128xf32>
    %9 = tpu.matmul %8, %7, %cst_8 {dimension_numbers = #tpu.dot_dimension_numbers<[1], [0], [0], [1], [0, 0, 1, 1], [], []>} : vector<32x32xf32>, vector<32x128xf32>, vector<32x128xf32> -> vector<32x128xf32>
    %c0_9 = arith.constant 0 : index
    %c0_10 = arith.constant 0 : index
    %10 = vector.load %arg5[%c0_9, %c0_10] : memref<32x1xf32, #tpu.memory_space<vmem>>, vector<32x1xf32>
    %11 = vector.broadcast %10 : vector<32x1xf32> to vector<32x128xf32>
    %12 = arith.addf %9, %11 : vector<32x128xf32>
    %cst_11 = arith.constant 0.000000e+00 : f32
    %13 = vector.broadcast %cst_11 : f32 to vector<32x128xf32>
    %14 = arith.maximumf %12, %13 : vector<32x128xf32>
    %c0_12 = arith.constant 0 : index
    %c0_13 = arith.constant 0 : index
    %15 = vector.load %arg6[%c0_12, %c0_13] : memref<32x1xf32, #tpu.memory_space<vmem>>, vector<32x1xf32>
    %16 = vector.broadcast %15 : vector<32x1xf32> to vector<32x128xf32>
    %17 = arith.mulf %14, %16 : vector<32x128xf32>
    %cst_14 = arith.constant dense<0.000000e+00> : vector<128xf32>
    %18 = vector.multi_reduction <add>, %17, %cst_14 [0] : vector<32x128xf32> to vector<128xf32>
    %19 = vector.shape_cast %18 : vector<128xf32> to vector<1x128xf32>
    %c0_15 = arith.constant 0 : index
    %c0_16 = arith.constant 0 : index
    %20 = memref.load %arg7[%c0_15, %c0_16] : memref<1x1xf32, #tpu.memory_space<smem>>
    %21 = vector.broadcast %20 : f32 to vector<1x128xf32>
    %22 = arith.addf %19, %21 : vector<1x128xf32>
    %c0_17 = arith.constant 0 : index
    %c0_18 = arith.constant 0 : index
    %23 = vector.load %arg8[%c0_17, %c0_18] : memref<1x128xf32, #tpu.memory_space<vmem>>, vector<1x128xf32>
    tpu.vector_store %arg8[%c0_17, %c0_18], %22 {strides = array<i32>} : memref<1x128xf32, #tpu.memory_space<vmem>>, vector<1x128xf32>,
    return
  }
  func.func @transform_0(%arg0: i32) -> (i32, i32) {
    %c0_i32 = arith.constant 0 : i32
    %c0_i32_0 = arith.constant 0 : i32
    return %c0_i32, %arg0 : i32, i32
  }
  func.func @transform_1(%arg0: i32) -> (i32, i32) {
    %c0_i32 = arith.constant 0 : i32
    %c0_i32_0 = arith.constant 0 : i32
    %c0_i32_1 = arith.constant 0 : i32
    return %c0_i32, %c0_i32_0 : i32, i32
  }
  func.func @transform_2(%arg0: i32) -> (i32, i32) {
    %c0_i32 = arith.constant 0 : i32
    %c0_i32_0 = arith.constant 0 : i32
    %c0_i32_1 = arith.constant 0 : i32
    return %c0_i32, %c0_i32_0 : i32, i32
  }
  func.func @transform_3(%arg0: i32) -> (i32, i32) {
    %c0_i32 = arith.constant 0 : i32
    %c0_i32_0 = arith.constant 0 : i32
    %c0_i32_1 = arith.constant 0 : i32
    return %c0_i32, %c0_i32_0 : i32, i32
  }
  func.func @transform_4(%arg0: i32) -> (i32, i32) {
    %c0_i32 = arith.constant 0 : i32
    %c0_i32_0 = arith.constant 0 : i32
    %c0_i32_1 = arith.constant 0 : i32
    return %c0_i32, %c0_i32_0 : i32, i32
  }
  func.func @transform_5(%arg0: i32) -> (i32, i32) {
    %c0_i32 = arith.constant 0 : i32
    %c0_i32_0 = arith.constant 0 : i32
    %c0_i32_1 = arith.constant 0 : i32
    return %c0_i32, %c0_i32_0 : i32, i32
  }
  func.func @transform_6(%arg0: i32) -> (i32, i32) {
    %c0_i32 = arith.constant 0 : i32
    %c0_i32_0 = arith.constant 0 : i32
    %c0_i32_1 = arith.constant 0 : i32
    return %c0_i32, %c0_i32_0 : i32, i32
  }
  func.func @transform_7(%arg0: i32) -> (i32, i32) {
    %c0_i32 = arith.constant 0 : i32
    %c0_i32_0 = arith.constant 0 : i32
    return %c0_i32, %arg0 : i32, i32
  }
}

</mosaic_0001>

<llo_original>
// kernel: tpu_custom_call.1
$region0: #{tpu_custom_call.1}
  #allocation0 [shape = 'u32[]', space=smem, size = 0x4, offset = 0x4, fixed_abs, tag = 'smem constant byte address 0x4 - core index']
  #allocation1 [shape = 'u32[144,128]{1,0:T(1,128)}', space=vmem, size = 0x12000, scoped, tag = 'internal scratch']
  #allocation2 [shape = 'f32[1,1]{1,0:T(1,128)S(6)}', space=smem, size = 0x200, scoped, tag = 'scoped memory for tpu_custom_call.1']
  %s0 = inlined_call_operand.vmem [shape: f32[16,128], index: 0, kind: input, shape index: {}]
  %s1 = inlined_call_operand.vmem [shape: f32[32,16], index: 1, kind: input, shape index: {}]
  %s2 = inlined_call_operand.vmem [shape: f32[32,1], index: 2, kind: input, shape index: {}]
  %s3 = inlined_call_operand.vmem [shape: f32[32,32], index: 3, kind: input, shape index: {}]
  %s4 = inlined_call_operand.vmem [shape: f32[32,1], index: 4, kind: input, shape index: {}]
  %s5 = inlined_call_operand.vmem [shape: f32[32,1], index: 5, kind: input, shape index: {}]
  %s6 = inlined_call_operand.<no memory space> [shape: f32[1,1], index: 6, kind: input, shape index: {}]
  %s7 = inlined_call_operand.hbm [shape: f32[1,128], index: 7, kind: output, shape index: {}]
  %s8 = sld [smem:[#allocation0]]
  $region38: #{tpu_custom_call.1} parent=0
    _
  %s10 = ssub.s32 1, %s8
  %s11 = scalar_select 0, %s10, %s8
  %12 = sst [smem:[#allocation2]] %s6
  $region1: #{tpu_custom_call.1} parent=0
    #allocation3 [shape = 'u8[512]{0}', space=vmem, size = 0x400, scoped, tag = 'output window, operand 0, single buffered']
    #allocation4 [shape = 's32[1]{0}', space=sflag, size = 0x4, scoped, tag = 'scoped memory for tpu_custom_call.1']
    %13 = vsyncpa [#allocation4], 0
    // Predicated region
    $region2: #{tpu_custom_call.1} parent=1 // pred_check
      _
    $region3: #{tpu_custom_call.1} parent=1 // pred_check_branch
      %15 = sbr.rel (0) target = $region5
    $region4: #{tpu_custom_call.1} parent=1 // pred_region
      _
    $region5: #{tpu_custom_call.1} parent=1 // pred_fallthru
      _
    // Predicated region
    $region6: #{tpu_custom_call.1} parent=1 // pred_check
      _
    $region7: #{tpu_custom_call.1} parent=1 // pred_check_branch
      %17 = sbr.rel (0) target = $region9
    $region8: #{tpu_custom_call.1} parent=1 // pred_region
      _
    $region9: #{tpu_custom_call.1} parent=1 // pred_fallthru
      _
    // Predicated region
    $region10: #{tpu_custom_call.1} parent=1 // pred_check
      _
    $region11: #{tpu_custom_call.1} parent=1 // pred_check_branch
      %19 = sbr.rel (0) target = $region13
    $region12: #{tpu_custom_call.1} parent=1 // pred_region
      _
    $region13: #{tpu_custom_call.1} parent=1 // pred_fallthru
      _
    // Predicated region
    $region14: #{tpu_custom_call.1} parent=1 // pred_check
      _
    $region15: #{tpu_custom_call.1} parent=1 // pred_check_branch
      %21 = sbr.rel (0) target = $region17
    $region16: #{tpu_custom_call.1} parent=1 // pred_region
      _
    $region17: #{tpu_custom_call.1} parent=1 // pred_fallthru
      _
    // Predicated region
    $region18: #{tpu_custom_call.1} parent=1 // pred_check
      _
    $region19: #{tpu_custom_call.1} parent=1 // pred_check_branch
      %23 = sbr.rel (0) target = $region21
    $region20: #{tpu_custom_call.1} parent=1 // pred_region
      _
    $region21: #{tpu_custom_call.1} parent=1 // pred_fallthru
      _
    // Predicated region
    $region22: #{tpu_custom_call.1} parent=1 // pred_check
      _
    $region23: #{tpu_custom_call.1} parent=1 // pred_check_branch
      %25 = sbr.rel (0) target = $region25
    $region24: #{tpu_custom_call.1} parent=1 // pred_region
      _
    $region25: #{tpu_custom_call.1} parent=1 // pred_fallthru
      _
    // Predicated region
    $region26: #{tpu_custom_call.1} parent=1 // pred_check
      _
    $region27: #{tpu_custom_call.1} parent=1 // pred_check_branch
      %27 = sbr.rel (0) target = $region29
    $region28: #{tpu_custom_call.1} parent=1 // pred_region
      _
    $region29: #{tpu_custom_call.1} parent=1 // pred_fallthru
      _
    %v28 = vld [vmem:[%s1] sm:$0xff]
    %v29 = vld [vmem:[%s1 + $0x8] sm:$0xff]
    %v30 = vld [vmem:[%s1 + $0x10] sm:$0xff]
    %v31 = vld [vmem:[%s1 + $0x18] sm:$0xff]
    %v32 = vld [vmem:[%s0] sm:$0xff]
    %v33 = vld [vmem:[%s0 + $0x8] sm:$0xff]
    %v34 = vld [vmem:[%s2] sm:$0xff]
    %v35 = vld [vmem:[%s2 + $0x8] sm:$0xff]
    %v36 = vld [vmem:[%s2 + $0x10] sm:$0xff]
    %v37 = vld [vmem:[%s2 + $0x18] sm:$0xff]
    %39 = vset.pattern.permute.xlu0 0
    %40 = vperm.xlu0 %39, %v34
    %v41 = vpop.permute.xlu0 %40
    %44 = vset.pattern.permute.xlu0 0
    %45 = vperm.xlu0 %44, %v35
    %v46 = vpop.permute.xlu0 %45
    %49 = vset.pattern.permute.xlu0 0
    %50 = vperm.xlu0 %49, %v36
    %v51 = vpop.permute.xlu0 %50
    %54 = vset.pattern.permute.xlu0 0
    %55 = vperm.xlu0 %54, %v37
    %v56 = vpop.permute.xlu0 %55
    %vm58 = vcmask 130048
    %v60 = vsel %vm58, %v28, 0
    %v63 = vsel %vm58, %v29, 0
    %v66 = vsel %vm58, %v30, 0
    %v69 = vsel %vm58, %v31, 0
    %71 = vmatprep.subr.mxu0 0.0
    %72 = vmatpush1.msra.mxu0 %v32
    %73 = vmatprep.subr.mxu0 0.0
    %74 = vmatpush1.msra.mxu0 %v33
    %75 = vmatprep.subr.mxu0 0.0
    %76 = vmatpush1.msra.mxu0 0.0
    %77 = vmatprep.subr.mxu0 0.0
    %78 = vmatpush1.msra.mxu0 0.0
    %79 = vmatprep.subr.mxu0 0.0
    %80 = vmatpush1.msra.mxu0 0.0
    %81 = vmatprep.subr.mxu0 0.0
    %82 = vmatpush1.msra.mxu0 0.0
    %83 = vmatprep.subr.mxu0 0.0
    %84 = vmatpush1.msra.mxu0 0.0
    %85 = vmatprep.subr.mxu0 0.0
    %86 = vmatpush1.msra.mxu0 0.0
    %87 = vmatprep.subr.mxu0 0.0
    %88 = vmatpush1.msra.mxu0 0.0
    %89 = vmatprep.subr.mxu0 0.0
    %90 = vmatpush1.msra.mxu0 0.0
    %91 = vmatprep.subr.mxu0 0.0
    %92 = vmatpush1.msra.mxu0 0.0
    %93 = vmatprep.subr.mxu0 0.0
    %94 = vmatpush1.msra.mxu0 0.0
    %95 = vmatprep.subr.mxu0 0.0
    %96 = vmatpush1.msra.mxu0 0.0
    %97 = vmatprep.subr.mxu0 0.0
    %98 = vmatpush1.msra.mxu0 0.0
    %99 = vmatprep.subr.mxu0 0.0
    %100 = vmatpush1.msra.mxu0 0.0
    %101 = vmatprep.subr.mxu0 0.0
    %102 = vmatpush1.msra.mxu0 0.0
    %103 = vmatprep.subr.mxu0 0.0
    %104 = vmatpush1.msra.mxu0 0.0
    %105 = vmatprep.subr.mxu0 0.0
    %106 = vmatpush1.msra.mxu0 0.0
    %107 = vmatprep.subr.mxu0 0.0
    %108 = vmatpush1.msra.mxu0 0.0
    %109 = vmatprep.subr.mxu0 0.0
    %110 = vmatpush1.msra.mxu0 0.0
    %111 = vmatprep.subr.mxu0 0.0
    %112 = vmatpush1.msra.mxu0 0.0
    %113 = vmatprep.subr.mxu0 0.0
    %114 = vmatpush1.msra.mxu0 0.0
    %115 = vmatprep.subr.mxu0 0.0
    %116 = vmatpush1.msra.mxu0 0.0
    %117 = vmatprep.subr.mxu0 0.0
    %118 = vmatpush1.msra.mxu0 0.0
    %119 = vmatprep.subr.mxu0 0.0
    %120 = vmatpush1.msra.mxu0 0.0
    %121 = vmatprep.subr.mxu0 0.0
    %122 = vmatpush1.msra.mxu0 0.0
    %123 = vmatprep.subr.mxu0 0.0
    %124 = vmatpush1.msra.mxu0 0.0
    %125 = vmatprep.subr.mxu0 0.0
    %126 = vmatpush1.msra.mxu0 0.0
    %127 = vmatprep.subr.mxu0 0.0
    %128 = vmatpush1.msra.mxu0 0.0
    %129 = vmatprep.subr.mxu0 0.0
    %130 = vmatpush1.msra.mxu0 0.0
    %131 = vmatprep.subr.mxu0 0.0
    %132 = vmatpush1.msra.mxu0 0.0
    %133 = vmatprep.subr.mxu0 0.0
    %134 = vmatpush1.msra.mxu0 0.0
    %135 = vmatprep.mubr.f32.mxu0 0.0
    %136 = vmatmul.mubr.f32.gmra.mrb[0].mxu0 %v60
    %v137 = vpop.f32.mrb[0].mxu0
    %v138 = vadd.f32 %v41, %v137
    %v139 = vpop.f32.mrb[0].mxu0
    %140 = vmatprep.mubr.f32.mxu0 0.0
    %141 = vmatmul.mubr.f32.gmra.mrb[0].mxu0 %v63
    %v142 = vpop.f32.mrb[0].mxu0
    %v143 = vadd.f32 %v46, %v142
    %v144 = vpop.f32.mrb[0].mxu0
    %145 = vmatprep.mubr.f32.mxu0 0.0
    %146 = vmatmul.mubr.f32.gmra.mrb[0].mxu0 %v66
    %v147 = vpop.f32.mrb[0].mxu0
    %v148 = vadd.f32 %v51, %v147
    %v149 = vpop.f32.mrb[0].mxu0
    %150 = vmatprep.mubr.f32.mxu0 0.0
    %151 = vmatmul.mubr.f32.gmra.mrb[0].mxu0 %v69
    %v152 = vpop.f32.mrb[0].mxu0
    %v153 = vadd.f32 %v56, %v152
    %v154 = vpop.f32.mrb[0].mxu0
    %155 = vdwg.mxu0
    %v156 = vmax.f32 %v138, 0.0
    %v157 = vmax.f32 %v143, 0.0
    %v158 = vmax.f32 %v148, 0.0
    %v159 = vmax.f32 %v153, 0.0
    %v160 = vld [vmem:[%s3] sm:$0xff]
    %v161 = vld [vmem:[%s3 + $0x8] sm:$0xff]
    %v162 = vld [vmem:[%s3 + $0x10] sm:$0xff]
    %v163 = vld [vmem:[%s3 + $0x18] sm:$0xff]
    %v164 = vld [vmem:[%s4] sm:$0xff]
    %v165 = vld [vmem:[%s4 + $0x8] sm:$0xff]
    %v166 = vld [vmem:[%s4 + $0x10] sm:$0xff]
    %v167 = vld [vmem:[%s4 + $0x18] sm:$0xff]
    %169 = vset.pattern.permute.xlu0 0
    %170 = vperm.xlu0 %169, %v164
    %v171 = vpop.permute.xlu0 %170
    %174 = vset.pattern.permute.xlu0 0
    %175 = vperm.xlu0 %174, %v165
    %v176 = vpop.permute.xlu0 %175
    %179 = vset.pattern.permute.xlu0 0
    %180 = vperm.xlu0 %179, %v166
    %v181 = vpop.permute.xlu0 %180
    %184 = vset.pattern.permute.xlu0 0
    %185 = vperm.xlu0 %184, %v167
    %v186 = vpop.permute.xlu0 %185
    %vm188 = vcmask 261120
    %v190 = vsel %vm188, %v160, 0
    %v193 = vsel %vm188, %v161, 0
    %v196 = vsel %vm188, %v162, 0
    %v199 = vsel %vm188, %v163, 0
    %201 = vmatprep.subr.mxu0 0.0
    %202 = vmatpush1.msra.mxu0 %v156
    %203 = vmatprep.subr.mxu0 0.0
    %204 = vmatpush1.msra.mxu0 %v157
    %205 = vmatprep.subr.mxu0 0.0
    %206 = vmatpush1.msra.mxu0 %v158
    %207 = vmatprep.subr.mxu0 0.0
    %208 = vmatpush1.msra.mxu0 %v159
    %209 = vmatprep.subr.mxu0 0.0
    %210 = vmatpush1.msra.mxu0 0.0
    %211 = vmatprep.subr.mxu0 0.0
    %212 = vmatpush1.msra.mxu0 0.0
    %213 = vmatprep.subr.mxu0 0.0
    %214 = vmatpush1.msra.mxu0 0.0
    %215 = vmatprep.subr.mxu0 0.0
    %216 = vmatpush1.msra.mxu0 0.0
    %217 = vmatprep.subr.mxu0 0.0
    %218 = vmatpush1.msra.mxu0 0.0
    %219 = vmatprep.subr.mxu0 0.0
    %220 = vmatpush1.msra.mxu0 0.0
    %221 = vmatprep.subr.mxu0 0.0
    %222 = vmatpush1.msra.mxu0 0.0
    %223 = vmatprep.subr.mxu0 0.0
    %224 = vmatpush1.msra.mxu0 0.0
    %225 = vmatprep.subr.mxu0 0.0
    %226 = vmatpush1.msra.mxu0 0.0
    %227 = vmatprep.subr.mxu0 0.0
    %228 = vmatpush1.msra.mxu0 0.0
    %229 = vmatprep.subr.mxu0 0.0
    %230 = vmatpush1.msra.mxu0 0.0
    %231 = vmatprep.subr.mxu0 0.0
    %232 = vmatpush1.msra.mxu0 0.0
    %233 = vmatprep.subr.mxu0 0.0
    %234 = vmatpush1.msra.mxu0 0.0
    %235 = vmatprep.subr.mxu0 0.0
    %236 = vmatpush1.msra.mxu0 0.0
    %237 = vmatprep.subr.mxu0 0.0
    %238 = vmatpush1.msra.mxu0 0.0
    %239 = vmatprep.subr.mxu0 0.0
    %240 = vmatpush1.msra.mxu0 0.0
    %241 = vmatprep.subr.mxu0 0.0
    %242 = vmatpush1.msra.mxu0 0.0
    %243 = vmatprep.subr.mxu0 0.0
    %244 = vmatpush1.msra.mxu0 0.0
    %245 = vmatprep.subr.mxu0 0.0
    %246 = vmatpush1.msra.mxu0 0.0
    %247 = vmatprep.subr.mxu0 0.0
    %248 = vmatpush1.msra.mxu0 0.0
    %249 = vmatprep.subr.mxu0 0.0
    %250 = vmatpush1.msra.mxu0 0.0
    %251 = vmatprep.subr.mxu0 0.0
    %252 = vmatpush1.msra.mxu0 0.0
    %253 = vmatprep.subr.mxu0 0.0
    %254 = vmatpush1.msra.mxu0 0.0
    %255 = vmatprep.subr.mxu0 0.0
    %256 = vmatpush1.msra.mxu0 0.0
    %257 = vmatprep.subr.mxu0 0.0
    %258 = vmatpush1.msra.mxu0 0.0
    %259 = vmatprep.subr.mxu0 0.0
    %260 = vmatpush1.msra.mxu0 0.0
    %261 = vmatprep.subr.mxu0 0.0
    %262 = vmatpush1.msra.mxu0 0.0
    %263 = vmatprep.subr.mxu0 0.0
    %264 = vmatpush1.msra.mxu0 0.0
    %265 = vmatprep.mubr.f32.mxu0 0.0
    %266 = vmatmul.mubr.f32.gmra.mrb[0].mxu0 %v190
    %v267 = vpop.f32.mrb[0].mxu0
    %v268 = vadd.f32 %v171, %v267
    %v269 = vpop.f32.mrb[0].mxu0
    %270 = vmatprep.mubr.f32.mxu0 0.0
    %271 = vmatmul.mubr.f32.gmra.mrb[0].mxu0 %v193
    %v272 = vpop.f32.mrb[0].mxu0
    %v273 = vadd.f32 %v176, %v272
    %v274 = vpop.f32.mrb[0].mxu0
    %275 = vmatprep.mubr.f32.mxu0 0.0
    %276 = vmatmul.mubr.f32.gmra.mrb[0].mxu0 %v196
    %v277 = vpop.f32.mrb[0].mxu0
    %v278 = vadd.f32 %v181, %v277
    %v279 = vpop.f32.mrb[0].mxu0
    %280 = vmatprep.mubr.f32.mxu0 0.0
    %281 = vmatmul.mubr.f32.gmra.mrb[0].mxu0 %v199
    %v282 = vpop.f32.mrb[0].mxu0
    %v283 = vadd.f32 %v186, %v282
    %v284 = vpop.f32.mrb[0].mxu0
    %285 = vdwg.mxu0
    %v286 = vmax.f32 %v268, 0.0
    %v287 = vmax.f32 %v273, 0.0
    %v288 = vmax.f32 %v278, 0.0
    %v289 = vmax.f32 %v283, 0.0
    %v290 = vld [vmem:[%s5] sm:$0xff]
    %v291 = vld [vmem:[%s5 + $0x8] sm:$0xff]
    %v292 = vld [vmem:[%s5 + $0x10] sm:$0xff]
    %v293 = vld [vmem:[%s5 + $0x18] sm:$0xff]
    %295 = vset.pattern.permute.xlu0 0
    %296 = vperm.xlu0 %295, %v290
    %v297 = vpop.permute.xlu0 %296
    %300 = vset.pattern.permute.xlu0 0
    %301 = vperm.xlu0 %300, %v291
    %v302 = vpop.permute.xlu0 %301
    %305 = vset.pattern.permute.xlu0 0
    %306 = vperm.xlu0 %305, %v292
    %v307 = vpop.permute.xlu0 %306
    %310 = vset.pattern.permute.xlu0 0
    %311 = vperm.xlu0 %310, %v293
    %v312 = vpop.permute.xlu0 %311
    %v314 = vmul.f32 %v286, %v297
    %v315 = vmul.f32 %v287, %v302
    %v316 = vmul.f32 %v288, %v307
    %v317 = vmul.f32 %v289, %v312
    %v318 = vadd.f32 %v314, %v315
    %v319 = vadd.f32 %v318, %v316
    %v320 = vadd.f32 %v319, %v317
    %v321 = vrot.slane %v320, 4
    %v322 = vadd.f32 %v320, %v321
    %v323 = vrot.slane %v322, 2
    %v324 = vadd.f32 %v322, %v323
    %v325 = vrot.slane %v324, 1
    %v326 = vadd.f32 %v324, %v325
    %s327 = sld [smem:[#allocation2]]
    %v328 = vstv %s327
    %v329 = vadd.f32 %v326, %v328
    %330 = vst [vmem:[#allocation3] sm:$0x1] %v329
    // Predicated region
    $region30: #{tpu_custom_call.1} parent=1 // pred_check
      _
    $region31: #{tpu_custom_call.1} parent=1 // pred_check_branch
      %332 = sbr.rel (0) target = $region33
    $region32: #{tpu_custom_call.1} parent=1 // pred_region
      %s334 = ssub.s32 16, 16
      %335 = vsyncadd [#allocation4], %s334
      %s337 = sshll.u32 [#allocation3], 4
      %s338 = int_to_ptr.vmem [resolvable:$true] %s337
      %340 = dma.vmem_to_hbm [thread:$0]  %s338, 16, %s7, [#allocation4]
    $region33: #{tpu_custom_call.1} parent=1 // pred_fallthru
      _
    // Predicated region
    $region34: #{tpu_custom_call.1} parent=1 // pred_check
      _
    $region35: #{tpu_custom_call.1} parent=1 // pred_check_branch
      %342 = sbr.rel (0) target = $region37
    $region36: #{tpu_custom_call.1} parent=1 // pred_region
      %343 = dma.done [#allocation4], 16
    $region37: #{tpu_custom_call.1} parent=1 // pred_fallthru
      _
    %344 = vsyncpa [#allocation4], 1

</llo_original>
